<compile_context>
chip_gen: v6e
topology: v6e:2x2x1
jax: 0.10.0
libtpu: 0.0.40
codegen_flags: <defaults>
</compile_context>

<pallas_src>
import math
from functools import partial

import jax
import jax.numpy as jnp
from jax import lax
from jax.experimental import pallas as pl
from jax.experimental.pallas import tpu as pltpu

EPSI = 1e-07
SIGMA_DATA = 1.0


def _vmem_capacity_bytes():
    """Physical VMEM per TensorCore; conservative fallback (v7x) if unknown."""
    try:
        info = pltpu.get_tpu_info()
        cap = getattr(info, "vmem_capacity_bytes", None)
        if cap:
            return int(cap)
    except Exception:
        pass
    return 64 * 1024 * 1024


def _pick_hw_tile(hw_pad, batch, c, hid, *, max_lanes=65536, min_grid=4):
    """Largest multiple of 128 dividing hw_pad that fits the VMEM budget and
    keeps the total grid (batch * num_tiles) >= min_grid (v7x has 2 TCs)."""
    budget = _vmem_capacity_bytes() // 2          # leave headroom for compiler
    # per-lane f32 bytes: double-buffered x/noise blocks + hidden/out temps
    bytes_per_lane = 4 * (4 * c + 3 * hid + 8 * c)
    cap = min(max_lanes, max(128, budget // bytes_per_lane))
    needed_tiles = max(1, -(-min_grid // max(batch, 1)))   # ceil(min_grid/B)
    cap = min(cap, max(128, hw_pad // needed_tiles), hw_pad)
    best = 128
    t = 128
    while t <= cap:
        if hw_pad % t == 0:
            best = t
        t += 128
    return best


def _gelu_sigmoid(x):
    # synthetic net's activation: x * sigmoid(1.702 x)  (2 VPU ops + 1 EUP op)
    return x * jax.nn.sigmoid(1.702 * x)


def _ve_diffusion_kernel(coef_ref,    # SMEM (B, 3) f32: [sigma, a_t, b_t]
                         x_ref,       # VMEM (C, HW_TILE) f32
                         noise_ref,   # VMEM (C, HW_TILE) f32
                         w1b_ref,     # VMEM (HID, C) f32  (c_in already folded in)
                         bias_ref,    # VMEM (HID, 1) f32  (b1 + c_noise*temb)
                         w2_ref,      # VMEM (C, HID) f32
                         b2_ref,      # VMEM (C, 1) f32
                         sse_ref,     # VMEM (1, 128) f32: per-(b,tile) partial SSE
                         *, hw_tile, hw_valid, needs_mask):
    b = pl.program_id(0)
    sig = coef_ref[b, 0]
    a_t = coef_ref[b, 1]
    b_t = coef_ref[b, 2]

    x = x_ref[...]                                   # (C, T)
    noise = noise_ref[...]

    # net input: c_in * (x + sigma*noise); the c_in scale lives in w1b, so only
    # one full-tile multiply-add here.
    net_in = x + sig * noise

    # Synthetic net: per-pixel MLP (1x1 convs) conditioned on c_noise.
    # K=C is tiny so the MXU is underfilled; kernel is HBM/VPU/EUP bound.
    h = jnp.dot(w1b_ref[...], net_in, preferred_element_type=jnp.float32)
    h = _gelu_sigmoid(h + bias_ref[...])             # (HID, T), one bias add
    x_pred = jnp.dot(w2_ref[...], h, preferred_element_type=jnp.float32)
    x_pred = x_pred + b2_ref[...]                    # (C, T)

    # v_target = (x - c_skip*x_noisy)/(c_out+EPSI) with coefficients pre-folded.
    v_target = a_t * x + b_t * noise
    diff = x_pred - v_target
    if needs_mask:                                   # static: only when HW was padded
        lane = lax.broadcasted_iota(jnp.int32, diff.shape, 1) \
            + pl.program_id(1) * hw_tile
        diff = jnp.where(lane < hw_valid, diff, 0.0)

    sse = jnp.sum(diff * diff)                       # partial SSE for this tile
    sse_ref[...] = jnp.full((1, 128), sse, dtype=jnp.float32)


def ve_elu_diffusion_loss(x, noise, sigmas, params, *, sigma_data=1.0, hw_tile=None):
    """x, noise: (B, C, H, W) f32; sigmas: (B,) f32. Returns (B,) losses."""
    B, C, H, W = x.shape
    HW = H * W
    w1, b1, temb, w2, b2 = params
    HID = w1.shape[0]

    # ---- per-batch VE scale weights, hoisted out of the kernel --------------
    sig = sigmas.astype(jnp.float32)
    sd2 = jnp.float32(sigma_data * sigma_data)
    denom = sig * sig + sd2
    inv = lax.rsqrt(denom)
    c_skip = sd2 / denom
    c_in = inv
    c_out = -sig * sigma_data * inv
    c_noise = jnp.arctan(sig) * (2.0 / math.pi)                 # sigma_to_t
    inv_cout = 1.0 / (c_out + EPSI)
    a_t = (1.0 - c_skip) * inv_cout                             # v_target = a_t*x + b_t*noise
    b_t = -(c_skip * sig) * inv_cout
    coef = jnp.stack([sig, a_t, b_t], axis=1)                   # (B, 3) -> SMEM

    # fold c_in into w1 and the c_noise conditioning into the bias, per batch
    w1b = c_in[:, None, None] * w1[None]                        # (B, HID, C)
    biasb = b1[None] + c_noise[:, None, None] * temb[None]      # (B, HID, 1)

    # ---- pad HW to a multiple of 128 so every tile is lane-aligned ----------
    HW_pad = -(-HW // 128) * 128
    needs_mask = HW_pad != HW
    x_f = x.reshape(B, C, HW)
    n_f = noise.reshape(B, C, HW)
    if needs_mask:
        pad = HW_pad - HW
        x_f = jnp.pad(x_f, ((0, 0), (0, 0), (0, pad)))
        n_f = jnp.pad(n_f, ((0, 0), (0, 0), (0, pad)))

    if hw_tile is None:
        hw_tile = _pick_hw_tile(HW_pad, B, C, HID)
    assert HW_pad % hw_tile == 0 and hw_tile % 128 == 0, (HW_pad, hw_tile)
    num_tiles = HW_pad // hw_tile

    vmem_cap = _vmem_capacity_bytes()
    vmem_limit = min(vmem_cap * 3 // 4, 100 * 1024 * 1024)      # ~48 MiB v7x, ~96 MiB v5e/v6e

    kernel = partial(_ve_diffusion_kernel, hw_tile=hw_tile, hw_valid=HW,
                     needs_mask=needs_mask)

    # Per-(batch, hw_tile) partial SSEs; combined in JAX below.
    sse = pl.pallas_call(
        kernel,
        out_shape=jax.ShapeDtypeStruct((B, num_tiles, 1, 128), jnp.float32),
        grid_spec=pltpu.PrefetchScalarGridSpec(
            num_scalar_prefetch=0,
            grid=(B, num_tiles),
            in_specs=[
                pl.BlockSpec(memory_space=pltpu.SMEM),                     # coef (B,3)
                pl.BlockSpec((None, C, hw_tile), lambda b, t: (b, 0, t)),  # x
                pl.BlockSpec((None, C, hw_tile), lambda b, t: (b, 0, t)),  # noise
                pl.BlockSpec((None, HID, C), lambda b, t: (b, 0, 0)),      # w1b (per batch)
                pl.BlockSpec((None, HID, 1), lambda b, t: (b, 0, 0)),      # bias (per batch)
                pl.BlockSpec((C, HID), lambda b, t: (0, 0)),               # w2
                pl.BlockSpec((C, 1), lambda b, t: (0, 0)),                 # b2
            ],
            out_specs=pl.BlockSpec((None, None, 1, 128),
                                   lambda b, t: (b, t, 0, 0)),
        ),
        compiler_params=pltpu.CompilerParams(
            dimension_semantics=("parallel", "parallel"),
            vmem_limit_bytes=int(vmem_limit)),
    )(coef, x_f, n_f, w1b, biasb, w2, b2)

    sse_per_b = jnp.sum(sse[:, :, 0, 0], axis=1)                # (B,)
    n_total = B * C * H * W
    # F.mse_loss(..., reduction='mean') -> global mean over all real elements,
    # then divided per-batch by sum(loss_mask, (1,2,3)) == C*H*W (all-ones mask),
    # exactly as the PyTorch VEluDiffusion.forward is written.
    mse = jnp.sum(sse_per_b) / n_total
    mask_sum = jnp.full((B,), float(C * H * W), dtype=jnp.float32)
    return mse / mask_sum                                        # (B,)


def _reference(x, noise, sigmas, params, sigma_data=1.0):
    """Pure-JAX reference matching the PyTorch forward (same noise / same net)."""
    w1, b1, temb, w2, b2 = params
    B, C, H, W = x.shape
    sig = sigmas.reshape(B, 1, 1, 1)
    x_noisy = x + sig * noise
    sd2 = sigma_data ** 2
    c_skip = sd2 / (sig ** 2 + sd2)
    c_out = -sig * sigma_data * (sd2 + sig ** 2) ** (-0.5)
    c_in = (sig ** 2 + sd2) ** (-0.5)
    c_noise = jnp.arctan(sigmas) / math.pi * 2.0
    u = (c_in * x_noisy).reshape(B, C, H * W)
    h = jnp.einsum("hc,bcs->bhs", w1, u) + b1 + c_noise[:, None, None] * temb
    h = _gelu_sigmoid(h)
    x_pred = (jnp.einsum("ch,bhs->bcs", w2, h) + b2).reshape(B, C, H, W)
    v_target = (x - c_skip * x_noisy) / (c_out + EPSI)
    mse = jnp.mean((x_pred - v_target) ** 2)
    return mse / jnp.full((B,), float(C * H * W), dtype=jnp.float32)


if __name__ == "__main__":
    B, C, H, W = 2, 4, 16, 16
    HID = 32

    key = jax.random.PRNGKey(0)
    kx, kn, ks, k1, k2, k3, k4, k5 = jax.random.split(key, 8)

    x = jax.random.normal(kx, (B, C, H, W), dtype=jnp.float32)
    noise = jax.random.normal(kn, (B, C, H, W), dtype=jnp.float32)
    sigmas = jax.random.uniform(ks, (B,), dtype=jnp.float32,
                                minval=0.1, maxval=2.0)

    # deterministic synthetic net parameters (per-pixel MLP / 1x1 convs)
    w1 = jax.random.normal(k1, (HID, C), dtype=jnp.float32) * 0.2
    b1 = jax.random.normal(k2, (HID, 1), dtype=jnp.float32) * 0.05
    temb = jax.random.normal(k3, (HID, 1), dtype=jnp.float32) * 0.1
    w2 = jax.random.normal(k4, (C, HID), dtype=jnp.float32) * 0.2
    b2 = jax.random.normal(k5, (C, 1), dtype=jnp.float32) * 0.05
    params = (w1, b1, temb, w2, b2)

    # 1) auto tile selection (VMEM-budget + min-grid constrained)
    loss = jax.block_until_ready(
        jax.jit(lambda *a: ve_elu_diffusion_loss(*a, sigma_data=SIGMA_DATA))(
            x, noise, sigmas, params))
    ref = _reference(x, noise, sigmas, params, sigma_data=SIGMA_DATA)
    assert loss.shape == (B,)
    assert jnp.allclose(loss, ref, rtol=1e-4, atol=1e-5), (loss, ref)

    # 2) explicit small tile -> exercises the multi-tile partial-SSE combine
    loss2 = jax.block_until_ready(
        jax.jit(lambda *a: ve_elu_diffusion_loss(
            *a, sigma_data=SIGMA_DATA, hw_tile=128))(x, noise, sigmas, params))
    assert jnp.allclose(loss2, ref, rtol=1e-4, atol=1e-5), (loss2, ref)

    # 3) HW not a multiple of 128 -> exercises the padded + masked-SSE path
    Hp, Wp = 10, 10
    xp = jax.random.normal(kx, (B, C, Hp, Wp), dtype=jnp.float32)
    noisep = jax.random.normal(kn, (B, C, Hp, Wp), dtype=jnp.float32)
    loss3 = jax.block_until_ready(
        jax.jit(lambda *a: ve_elu_diffusion_loss(*a, sigma_data=SIGMA_DATA))(
            xp, noisep, sigmas, params))
    ref3 = _reference(xp, noisep, sigmas, params, sigma_data=SIGMA_DATA)
    assert jnp.allclose(loss3, ref3, rtol=1e-4, atol=1e-5), (loss3, ref3)

    print("KERNEL_OK")
</pallas_src>

<mosaic_0001>
module attributes {stable_mosaic.version = 11 : i64} {
  func.func @_ve_diffusion_kernel(%arg0: i32, %arg1: i32, %arg2: memref<2x3xf32, #tpu.memory_space<smem>>, %arg3: memref<1x4x128xf32, #tpu.memory_space<vmem>>, %arg4: memref<1x4x128xf32, #tpu.memory_space<vmem>>, %arg5: memref<1x32x4xf32, #tpu.memory_space<vmem>>, %arg6: memref<1x32x1xf32, #tpu.memory_space<vmem>>, %arg7: memref<4x32xf32, #tpu.memory_space<vmem>>, %arg8: memref<4x1xf32, #tpu.memory_space<vmem>>, %arg9: memref<1x1x1x128xf32, #tpu.memory_space<vmem>>) attributes {dimension_semantics = [#tpu.dimension_semantics<parallel>, #tpu.dimension_semantics<parallel>], iteration_bounds = array<i64: 2, 2>, scalar_prefetch = 0 : i64, scratch_operands = 0 : i64, tpu.core_type = #tpu.core_type<tc>, window_params = [{transform_indices = @transform_0, window_bounds = array<i64: 2, 3>}, {transform_indices = @transform_1, window_bounds = array<i64: 1, 4, 128>}, {transform_indices = @transform_2, window_bounds = array<i64: 1, 4, 128>}, {transform_indices = @transform_3, window_bounds = array<i64: 1, 32, 4>}, {transform_indices = @transform_4, window_bounds = array<i64: 1, 32, 1>}, {pipeline_mode = #tpu.pipeline_mode<synchronous>, transform_indices = @transform_5, window_bounds = array<i64: 4, 32>}, {pipeline_mode = #tpu.pipeline_mode<synchronous>, transform_indices = @transform_6, window_bounds = array<i64: 4, 1>}, {transform_indices = @transform_7, window_bounds = array<i64: 1, 1, 1, 128>}]} {
    %0 = arith.index_cast %arg0 : i32 to index
    %c0 = arith.constant 0 : index
    %1 = memref.load %arg2[%0, %c0] : memref<2x3xf32, #tpu.memory_space<smem>>
    %2 = arith.index_cast %arg0 : i32 to index
    %c1 = arith.constant 1 : index
    %3 = memref.load %arg2[%2, %c1] : memref<2x3xf32, #tpu.memory_space<smem>>
    %4 = arith.index_cast %arg0 : i32 to index
    %c2 = arith.constant 2 : index
    %5 = memref.load %arg2[%4, %c2] : memref<2x3xf32, #tpu.memory_space<smem>>
    %c0_0 = arith.constant 0 : index
    %c0_1 = arith.constant 0 : index
    %c0_2 = arith.constant 0 : index
    %6 = vector.load %arg3[%c0_0, %c0_1, %c0_2] : memref<1x4x128xf32, #tpu.memory_space<vmem>>, vector<1x4x128xf32>
    %7 = vector.shape_cast %6 : vector<1x4x128xf32> to vector<4x128xf32>
    %c0_3 = arith.constant 0 : index
    %c0_4 = arith.constant 0 : index
    %c0_5 = arith.constant 0 : index
    %8 = vector.load %arg4[%c0_3, %c0_4, %c0_5] : memref<1x4x128xf32, #tpu.memory_space<vmem>>, vector<1x4x128xf32>
    %9 = vector.shape_cast %8 : vector<1x4x128xf32> to vector<4x128xf32>
    %10 = vector.broadcast %1 : f32 to vector<4x128xf32>
    %11 = arith.mulf %10, %9 : vector<4x128xf32>
    %12 = arith.addf %7, %11 : vector<4x128xf32>
    %c0_6 = arith.constant 0 : index
    %c0_7 = arith.constant 0 : index
    %c0_8 = arith.constant 0 : index
    %13 = vector.load %arg5[%c0_6, %c0_7, %c0_8] : memref<1x32x4xf32, #tpu.memory_space<vmem>>, vector<1x32x4xf32>
    %14 = vector.shape_cast %13 : vector<1x32x4xf32> to vector<32x4xf32>
    %cst = arith.constant dense<0.000000e+00> : vector<32x128xf32>
    %15 = tpu.matmul %14, %12, %cst {dimension_numbers = #tpu.dot_dimension_numbers<[1], [0], [0], [1], [0, 0, 1, 1], [], []>} : vector<32x4xf32>, vector<4x128xf32>, vector<32x128xf32> -> vector<32x128xf32>
    %c0_9 = arith.constant 0 : index
    %c0_10 = arith.constant 0 : index
    %c0_11 = arith.constant 0 : index
    %16 = vector.load %arg6[%c0_9, %c0_10, %c0_11] : memref<1x32x1xf32, #tpu.memory_space<vmem>>, vector<1x32x1xf32>
    %17 = vector.shape_cast %16 : vector<1x32x1xf32> to vector<32x1xf32>
    %18 = vector.broadcast %17 : vector<32x1xf32> to vector<32x128xf32>
    %19 = arith.addf %15, %18 : vector<32x128xf32>
    %cst_12 = arith.constant 1.702000e+00 : f32
    %20 = vector.broadcast %cst_12 : f32 to vector<32x128xf32>
    %21 = arith.mulf %20, %19 : vector<32x128xf32>
    %22 = arith.negf %21 : vector<32x128xf32>
    %23 = math.exp %22 : vector<32x128xf32>
    %cst_13 = arith.constant 1.000000e+00 : f32
    %24 = vector.broadcast %cst_13 : f32 to vector<32x128xf32>
    %25 = arith.addf %24, %23 : vector<32x128xf32>
    %26 = arith.divf %24, %25 : vector<32x128xf32>
    %27 = arith.mulf %19, %26 : vector<32x128xf32>
    %c0_14 = arith.constant 0 : index
    %c0_15 = arith.constant 0 : index
    %28 = vector.load %arg7[%c0_14, %c0_15] : memref<4x32xf32, #tpu.memory_space<vmem>>, vector<4x32xf32>
    %cst_16 = arith.constant dense<0.000000e+00> : vector<4x128xf32>
    %29 = tpu.matmul %28, %27, %cst_16 {dimension_numbers = #tpu.dot_dimension_numbers<[1], [0], [0], [1], [0, 0, 1, 1], [], []>} : vector<4x32xf32>, vector<32x128xf32>, vector<4x128xf32> -> vector<4x128xf32>
    %c0_17 = arith.constant 0 : index
    %c0_18 = arith.constant 0 : index
    %30 = vector.load %arg8[%c0_17, %c0_18] : memref<4x1xf32, #tpu.memory_space<vmem>>, vector<4x1xf32>
    %31 = vector.broadcast %30 : vector<4x1xf32> to vector<4x128xf32>
    %32 = arith.addf %29, %31 : vector<4x128xf32>
    %33 = vector.broadcast %3 : f32 to vector<4x128xf32>
    %34 = arith.mulf %33, %7 : vector<4x128xf32>
    %35 = vector.broadcast %5 : f32 to vector<4x128xf32>
    %36 = arith.mulf %35, %9 : vector<4x128xf32>
    %37 = arith.addf %34, %36 : vector<4x128xf32>
    %38 = arith.subf %32, %37 : vector<4x128xf32>
    %39 = arith.mulf %38, %38 : vector<4x128xf32>
    %40 = vector.shape_cast %39 : vector<4x128xf32> to vector<1x4x128xf32>
    %cst_19 = arith.constant dense<0.000000e+00> : vector<1xf32>
    %41 = vector.multi_reduction <add>, %40, %cst_19 [1, 2] : vector<1x4x128xf32> to vector<1xf32>
    %42 = vector.shape_cast %41 : vector<1xf32> to vector<1x1x1xf32>
    %43 = vector.extract %42[0, 0, 0] : f32 from vector<1x1x1xf32>
    %44 = vector.broadcast %43 : f32 to vector<1x128xf32>
    %c0_20 = arith.constant 0 : index
    %c0_21 = arith.constant 0 : index
    %c0_22 = arith.constant 0 : index
    %c0_23 = arith.constant 0 : index
    %45 = vector.load %arg9[%c0_20, %c0_21, %c0_22, %c0_23] : memref<1x1x1x128xf32, #tpu.memory_space<vmem>>, vector<1x1x1x128xf32>
    %46 = vector.shape_cast %45 : vector<1x1x1x128xf32> to vector<1x128xf32>
    %47 = vector.shape_cast %44 : vector<1x128xf32> to vector<1x1x1x128xf32>
    tpu.vector_store %arg9[%c0_20, %c0_21, %c0_22, %c0_23], %47 {strides = array<i32>} : memref<1x1x1x128xf32, #tpu.memory_space<vmem>>, vector<1x1x1x128xf32>,
    return
  }
  func.func @transform_0(%arg0: i32, %arg1: i32) -> (i32, i32) {
    %c0_i32 = arith.constant 0 : i32
    %c0_i32_0 = arith.constant 0 : i32
    %c0_i32_1 = arith.constant 0 : i32
    return %c0_i32, %c0_i32_0 : i32, i32
  }
  func.func @transform_1(%arg0: i32, %arg1: i32) -> (i32, i32, i32) {
    %c0_i32 = arith.constant 0 : i32
    %c0_i32_0 = arith.constant 0 : i32
    return %arg0, %c0_i32, %arg1 : i32, i32, i32
  }
  func.func @transform_2(%arg0: i32, %arg1: i32) -> (i32, i32, i32) {
    %c0_i32 = arith.constant 0 : i32
    %c0_i32_0 = arith.constant 0 : i32
    return %arg0, %c0_i32, %arg1 : i32, i32, i32
  }
  func.func @transform_3(%arg0: i32, %arg1: i32) -> (i32, i32, i32) {
    %c0_i32 = arith.constant 0 : i32
    %c0_i32_0 = arith.constant 0 : i32
    %c0_i32_1 = arith.constant 0 : i32
    return %arg0, %c0_i32, %c0_i32_0 : i32, i32, i32
  }
  func.func @transform_4(%arg0: i32, %arg1: i32) -> (i32, i32, i32) {
    %c0_i32 = arith.constant 0 : i32
    %c0_i32_0 = arith.constant 0 : i32
    %c0_i32_1 = arith.constant 0 : i32
    return %arg0, %c0_i32, %c0_i32_0 : i32, i32, i32
  }
  func.func @transform_5(%arg0: i32, %arg1: i32) -> (i32, i32) {
    %c0_i32 = arith.constant 0 : i32
    %c0_i32_0 = arith.constant 0 : i32
    %c0_i32_1 = arith.constant 0 : i32
    return %c0_i32, %c0_i32_0 : i32, i32
  }
  func.func @transform_6(%arg0: i32, %arg1: i32) -> (i32, i32) {
    %c0_i32 = arith.constant 0 : i32
    %c0_i32_0 = arith.constant 0 : i32
    %c0_i32_1 = arith.constant 0 : i32
    return %c0_i32, %c0_i32_0 : i32, i32
  }
  func.func @transform_7(%arg0: i32, %arg1: i32) -> (i32, i32, i32, i32) {
    %c0_i32 = arith.constant 0 : i32
    %c0_i32_0 = arith.constant 0 : i32
    %c0_i32_1 = arith.constant 0 : i32
    return %arg0, %arg1, %c0_i32, %c0_i32_0 : i32, i32, i32, i32
  }
}

</mosaic_0001>

<llo_original>
// kernel: _lambda_.1
$region0: #{_lambda_.1}
  #allocation0 [shape = 'u32[]', space=smem, size = 0x4, offset = 0x4, fixed_abs, tag = 'smem constant byte address 0x4 - core index']
  #allocation1 [shape = 'u32[144,128]{1,0:T(1,128)}', space=vmem, size = 0x12000, scoped, tag = 'internal scratch']
  %s0 = inlined_call_operand.vmem [shape: f32[2,3], index: 0, kind: input, shape index: {}]
  %s1 = inlined_call_operand.vmem [shape: f32[2,4,256], index: 1, kind: input, shape index: {}]
  %s2 = inlined_call_operand.vmem [shape: f32[2,4,256], index: 2, kind: input, shape index: {}]
  %s3 = inlined_call_operand.vmem [shape: f32[2,32,4], index: 3, kind: input, shape index: {}]
  %s4 = inlined_call_operand.vmem [shape: f32[2,32,1], index: 4, kind: input, shape index: {}]
  %s5 = inlined_call_operand.vmem [shape: f32[4,32], index: 5, kind: input, shape index: {}]
  %s6 = inlined_call_operand.vmem [shape: f32[4,1], index: 6, kind: input, shape index: {}]
  %s7 = inlined_call_operand.vmem [shape: f32[2,2,1,128], index: 7, kind: output, shape index: {}]
  %s8 = sld [smem:[#allocation0]]
  $region65: #{_lambda_.1} parent=0
    _
  %s10 = ssub.s32 1, %s8
  %s11 = scalar_select 0, %s10, %s8
  $region1: #{_lambda_.1} parent=0
    #allocation2 [shape = 'u8[1024]{0}', space=smem, size = 0x400, scoped, tag = 'input window, operand 0, single buffered']
    #allocation3 [shape = 's32[2]{0}', space=sflag, size = 0x8, scoped, tag = 'scoped memory for _lambda_.1']
    %12 = vsyncpa [#allocation3], 0
    loop: start=0, step=1, limit=6
    $region2: #{_lambda_.1} parent=1 // loop_pre_header
      _
    $region3: #{_lambda_.1} parent=1 // loop_header
      %s14 = sphi 0, %s18
      %p15 = scmp.ge.s32.totalorder %s14, 6
      %s21 = sphi 0, %s33
      %s22 = sphi 0, %s29
      %s23 = sphi 0, %s21
      %s24 = sphi 0, %s22
      %s25 = sphi 0, %s23
      %s26 = sphi 0, %s24
      %s34 = sphi 0, %s34
      %s36 = sphi 0, %s34
      %s37 = sphi 0, %s36
      %s51 = sphi 0, %s37
      %s59 = sphi 0, %s61
      %s62 = sphi 0, %s59
      %s63 = sphi 0, %s62
      %s79 = sphi 0, %s63
      %s87 = sphi 0, %s89
      %s90 = sphi 0, %s87
      %s91 = sphi 0, %s90
      %s107 = sphi 0, %s91
      %s113 = sphi 0, %s115
      %s116 = sphi 0, %s113
      %s117 = sphi 0, %s116
      %s133 = sphi 0, %s117
      %s139 = sphi 0, %s141
      %s142 = sphi 0, %s139
      %s143 = sphi 0, %s142
      %s159 = sphi 0, %s143
      %s163 = sphi 0, %s163
      %s165 = sphi 0, %s163
      %s166 = sphi 0, %s165
      %s180 = sphi 0, %s166
      %s184 = sphi 0, %s184
      %s186 = sphi 0, %s184
      %s187 = sphi 0, %s186
      %s201 = sphi 0, %s187
      %s209 = sphi 0, %s211
      %s212 = sphi 0, %s209
      %s213 = sphi 0, %s212
      %s229 = sphi 0, %s213
    $region4: #{_lambda_.1} parent=1 // loop_header_branch
      %17 = sbr.rel (%p15) target = $region8
    $region5: #{_lambda_.1} parent=1 // loop_body
      %s19 = ssub.s32 %s14, 1
      %s20 = ssub.s32 %s14, 2
      %s27 = sadd.s32 1, %s22
      %p28 = scmp.ge.s32.totalorder %s27, 2
      %s29 = scalar_select %p28, 0, %s27
      %s30 = sadd.s32 1, %s21
      %s31 = scalar_select %p28, %s30, %s21
      %p32 = scmp.ge.s32.totalorder %s31, 2
      %s33 = scalar_select %p32, 0, %s31
      %s35 = sadd.s32 %s34, 1
      %p38 = scmp.eq.s32.totalorder %s14, 3
      %p39 = scmp.ne.s32.totalorder %s34, %s36
      %p40 = scmp.eq.s32.totalorder %s14, 0
      %p41 = por %p39, %p40
      %p42 = scmp.ne.s32.totalorder %s34, %s36
      %p43 = scmp.eq.s32.totalorder %s19, 3
      %p44 = por %p42, %p43
      %p45 = scmp.ne.s32.totalorder %s36, %s37
      %p46 = scmp.eq.s32.totalorder %s19, 0
      %p47 = por %p45, %p46
      %p48 = scmp.ne.s32.totalorder %s36, %s37
      %p49 = scmp.eq.s32.totalorder %s20, 3
      %p50 = por %p48, %p49
      %p52 = scmp.ne.s32.totalorder %s37, %s51
      %p53 = scmp.eq.s32.totalorder %s20, 0
      %p54 = por %p52, %p53
      %s55 = ssub.s32 %s21, %s33
      %s56 = ssub.s32 %s22, %s29
      %s57 = sor.u32 %s55, %s56
      %p58 = scmp.eq.s32.totalorder %s57, 0
      %s60 = sadd.s32 %s59, 1
      %s61 = scalar_select %p58, %s59, %s60
      %p64 = pneg %p58
      %p65 = scmp.eq.s32.totalorder %s14, 3
      %p66 = por %p64, %p65
      %p67 = scmp.ne.s32.totalorder %s59, %s62
      %p68 = scmp.eq.s32.totalorder %s14, 0
      %p69 = por %p67, %p68
      %p70 = scmp.ne.s32.totalorder %s59, %s62
      %p71 = scmp.eq.s32.totalorder %s19, 3
      %p72 = por %p70, %p71
      %p73 = scmp.ne.s32.totalorder %s62, %s63
      %p74 = scmp.eq.s32.totalorder %s19, 0
      %p75 = por %p73, %p74
      %p76 = scmp.ne.s32.totalorder %s62, %s63
      %p77 = scmp.eq.s32.totalorder %s20, 3
      %p78 = por %p76, %p77
      %p80 = scmp.ne.s32.totalorder %s63, %s79
      %p81 = scmp.eq.s32.totalorder %s20, 0
      %p82 = por %p80, %p81
      %s83 = ssub.s32 %s21, %s33
      %s84 = ssub.s32 %s22, %s29
      %s85 = sor.u32 %s83, %s84
      %p86 = scmp.eq.s32.totalorder %s85, 0
      %s88 = sadd.s32 %s87, 1
      %s89 = scalar_select %p86, %s87, %s88
      %p92 = pneg %p86
      %p93 = scmp.eq.s32.totalorder %s14, 3
      %p94 = por %p92, %p93
      %p95 = scmp.ne.s32.totalorder %s87, %s90
      %p96 = scmp.eq.s32.totalorder %s14, 0
      %p97 = por %p95, %p96
      %p98 = scmp.ne.s32.totalorder %s87, %s90
      %p99 = scmp.eq.s32.totalorder %s19, 3
      %p100 = por %p98, %p99
      %p101 = scmp.ne.s32.totalorder %s90, %s91
      %p102 = scmp.eq.s32.totalorder %s19, 0
      %p103 = por %p101, %p102
      %p104 = scmp.ne.s32.totalorder %s90, %s91
      %p105 = scmp.eq.s32.totalorder %s20, 3
      %p106 = por %p104, %p105
      %p108 = scmp.ne.s32.totalorder %s91, %s107
      %p109 = scmp.eq.s32.totalorder %s20, 0
      %p110 = por %p108, %p109
      %s111 = ssub.s32 %s21, %s33
      %p112 = scmp.eq.s32.totalorder %s111, 0
      %s114 = sadd.s32 %s113, 1
      %s115 = scalar_select %p112, %s113, %s114
      %p118 = pneg %p112
      %p119 = scmp.eq.s32.totalorder %s14, 3
      %p120 = por %p118, %p119
      %p121 = scmp.ne.s32.totalorder %s113, %s116
      %p122 = scmp.eq.s32.totalorder %s14, 0
      %p123 = por %p121, %p122
      %p124 = scmp.ne.s32.totalorder %s113, %s116
      %p125 = scmp.eq.s32.totalorder %s19, 3
      %p126 = por %p124, %p125
      %p127 = scmp.ne.s32.totalorder %s116, %s117
      %p128 = scmp.eq.s32.totalorder %s19, 0
      %p129 = por %p127, %p128
      %p130 = scmp.ne.s32.totalorder %s116, %s117
      %p131 = scmp.eq.s32.totalorder %s20, 3
      %p132 = por %p130, %p131
      %p134 = scmp.ne.s32.totalorder %s117, %s133
      %p135 = scmp.eq.s32.totalorder %s20, 0
      %p136 = por %p134, %p135
      %s137 = ssub.s32 %s21, %s33
      %p138 = scmp.eq.s32.totalorder %s137, 0
      %s140 = sadd.s32 %s139, 1
      %s141 = scalar_select %p138, %s139, %s140
      %p144 = pneg %p138
      %p145 = scmp.eq.s32.totalorder %s14, 3
      %p146 = por %p144, %p145
      %p147 = scmp.ne.s32.totalorder %s139, %s142
      %p148 = scmp.eq.s32.totalorder %s14, 0
      %p149 = por %p147, %p148
      %p150 = scmp.ne.s32.totalorder %s139, %s142
      %p151 = scmp.eq.s32.totalorder %s19, 3
      %p152 = por %p150, %p151
      %p153 = scmp.ne.s32.totalorder %s142, %s143
      %p154 = scmp.eq.s32.totalorder %s19, 0
      %p155 = por %p153, %p154
      %p156 = scmp.ne.s32.totalorder %s142, %s143
      %p157 = scmp.eq.s32.totalorder %s20, 3
      %p158 = por %p156, %p157
      %p160 = scmp.ne.s32.totalorder %s143, %s159
      %p161 = scmp.eq.s32.totalorder %s20, 0
      %p162 = por %p160, %p161
      %s164 = sadd.s32 %s163, 1
      %p167 = scmp.eq.s32.totalorder %s14, 3
      %p168 = scmp.ne.s32.totalorder %s163, %s165
      %p169 = scmp.eq.s32.totalorder %s14, 0
      %p170 = por %p168, %p169
      %p171 = scmp.ne.s32.totalorder %s163, %s165
      %p172 = scmp.eq.s32.totalorder %s19, 3
      %p173 = por %p171, %p172
      %p174 = scmp.ne.s32.totalorder %s165, %s166
      %p175 = scmp.eq.s32.totalorder %s19, 0
      %p176 = por %p174, %p175
      %p177 = scmp.ne.s32.totalorder %s165, %s166
      %p178 = scmp.eq.s32.totalorder %s20, 3
      %p179 = por %p177, %p178
      %p181 = scmp.ne.s32.totalorder %s166, %s180
      %p182 = scmp.eq.s32.totalorder %s20, 0
      %p183 = por %p181, %p182
      %s185 = sadd.s32 %s184, 1
      %p188 = scmp.eq.s32.totalorder %s14, 3
      %p189 = scmp.ne.s32.totalorder %s184, %s186
      %p190 = scmp.eq.s32.totalorder %s14, 0
      %p191 = por %p189, %p190
      %p192 = scmp.ne.s32.totalorder %s184, %s186
      %p193 = scmp.eq.s32.totalorder %s19, 3
      %p194 = por %p192, %p193
      %p195 = scmp.ne.s32.totalorder %s186, %s187
      %p196 = scmp.eq.s32.totalorder %s19, 0
      %p197 = por %p195, %p196
      %p198 = scmp.ne.s32.totalorder %s186, %s187
      %p199 = scmp.eq.s32.totalorder %s20, 3
      %p200 = por %p198, %p199
      %p202 = scmp.ne.s32.totalorder %s187, %s201
      %p203 = scmp.eq.s32.totalorder %s20, 0
      %p204 = por %p202, %p203
      %s205 = ssub.s32 %s21, %s33
      %s206 = ssub.s32 %s22, %s29
      %s207 = sor.u32 %s205, %s206
      %p208 = scmp.eq.s32.totalorder %s207, 0
      %s210 = sadd.s32 %s209, 1
      %s211 = scalar_select %p208, %s209, %s210
      %p214 = pneg %p208
      %p215 = scmp.eq.s32.totalorder %s14, 3
      %p216 = por %p214, %p215
      %p217 = scmp.ne.s32.totalorder %s209, %s212
      %p218 = scmp.eq.s32.totalorder %s14, 0
      %p219 = por %p217, %p218
      %p220 = scmp.ne.s32.totalorder %s209, %s212
      %p221 = scmp.eq.s32.totalorder %s19, 3
      %p222 = por %p220, %p221
      %p223 = scmp.ne.s32.totalorder %s212, %s213
      %p224 = scmp.eq.s32.totalorder %s19, 0
      %p225 = por %p223, %p224
      %p226 = scmp.ne.s32.totalorder %s212, %s213
      %p227 = scmp.eq.s32.totalorder %s20, 3
      %p228 = por %p226, %p227
      %p230 = scmp.ne.s32.totalorder %s213, %s229
      %p231 = scmp.eq.s32.totalorder %s20, 0
      %p232 = por %p230, %p231
      %p233 = scmp.le.s32.totalorder 1, %s14
      %p234 = scmp.lt.s32.totalorder %s14, 5
      %p235 = pnand %p233, %p234
      %p236 = pneg %p235
      // Predicated region
      $region9: #{_lambda_.1} parent=5 // pred_check
        _
      $region10: #{_lambda_.1} parent=5 // pred_check_branch
        %238 = sbr.rel (%p235) target = $region12
      $region11: #{_lambda_.1} parent=5 // pred_region
        %s239 = ssub.s32 %s14, 1
        // Predicated region
        $region13: #{_lambda_.1} parent=11 // pred_check
          %p240 = pneg %p47
        $region14: #{_lambda_.1} parent=11 // pred_check_branch
          %242 = sbr.rel (%p240) target = $region16
        $region15: #{_lambda_.1} parent=11 // pred_region
          %s244 = ssub.s32 32, 32
          %245 = vsyncadd [#allocation3], %s244
          %s247 = sshll.u32 %s0, 4
          %s248 = int_to_ptr.vmem [resolvable:$true] %s247
          %250 = dma.vmem_to_smem %s248, 32, [#allocation2], [#allocation3]
        $region16: #{_lambda_.1} parent=11 // pred_fallthru
          _
        // Predicated region
        $region17: #{_lambda_.1} parent=11 // pred_check
          %p251 = pneg %p176
        $region18: #{_lambda_.1} parent=11 // pred_check_branch
          %253 = sbr.rel (%p251) target = $region20
        $region19: #{_lambda_.1} parent=11 // pred_region
          _
        $region20: #{_lambda_.1} parent=11 // pred_fallthru
          _
        // Predicated region
        $region21: #{_lambda_.1} parent=11 // pred_check
          %p254 = pneg %p197
        $region22: #{_lambda_.1} parent=11 // pred_check_branch
          %256 = sbr.rel (%p254) target = $region24
        $region23: #{_lambda_.1} parent=11 // pred_region
          _
        $region24: #{_lambda_.1} parent=11 // pred_fallthru
          _
      $region12: #{_lambda_.1} parent=5 // pred_fallthru
        _
      %p257 = scmp.lt.s32.totalorder %s14, 4
      // Predicated region
      $region25: #{_lambda_.1} parent=5 // pred_check
        %p258 = pneg %p257
      $region26: #{_lambda_.1} parent=5 // pred_check_branch
        %260 = sbr.rel (%p258) target = $region28
      $region27: #{_lambda_.1} parent=5 // pred_region
        // Predicated region
        $region29: #{_lambda_.1} parent=27 // pred_check
          %p261 = pneg %p69
        $region30: #{_lambda_.1} parent=27 // pred_check_branch
          %263 = sbr.rel (%p261) target = $region32
        $region31: #{_lambda_.1} parent=27 // pred_region
          %p264 = scmp.lt.s32.totalorder %s21, 1
          %s265 = scalar_select %p264, %s21, 1
          %p266 = scmp.lt.s32.totalorder %s22, 1
          %s267 = scalar_select %p266, %s22, 1
          %s268 = smul.addr %s265, 2
          %s269 = sadd.s32 %s267, %s268
          %s270 = smul.addr %s269, 4
          %s271 = scalar_lea.vmem %s1, %s270
        $region32: #{_lambda_.1} parent=27 // pred_fallthru
          _
        // Predicated region
        $region33: #{_lambda_.1} parent=27 // pred_check
          %p272 = pneg %p97
        $region34: #{_lambda_.1} parent=27 // pred_check_branch
          %274 = sbr.rel (%p272) target = $region36
        $region35: #{_lambda_.1} parent=27 // pred_region
          %p275 = scmp.lt.s32.totalorder %s21, 1
          %s276 = scalar_select %p275, %s21, 1
          %p277 = scmp.lt.s32.totalorder %s22, 1
          %s278 = scalar_select %p277, %s22, 1
          %s279 = smul.addr %s276, 2
          %s280 = sadd.s32 %s278, %s279
          %s281 = smul.addr %s280, 4
          %s282 = scalar_lea.vmem %s2, %s281
        $region36: #{_lambda_.1} parent=27 // pred_fallthru
          _
        // Predicated region
        $region37: #{_lambda_.1} parent=27 // pred_check
          %p283 = pneg %p123
        $region38: #{_lambda_.1} parent=27 // pred_check_branch
          %285 = sbr.rel (%p283) target = $region40
        $region39: #{_lambda_.1} parent=27 // pred_region
          %p286 = scmp.lt.s32.totalorder %s21, 1
          %s287 = scalar_select %p286, %s21, 1
          %s288 = smul.addr %s287, 4
          %s289 = smul.addr %s288, 8
          %s290 = scalar_lea.vmem %s3, %s289
        $region40: #{_lambda_.1} parent=27 // pred_fallthru
          _
        // Predicated region
        $region41: #{_lambda_.1} parent=27 // pred_check
          %p291 = pneg %p149
        $region42: #{_lambda_.1} parent=27 // pred_check_branch
          %293 = sbr.rel (%p291) target = $region44
        $region43: #{_lambda_.1} parent=27 // pred_region
          %p294 = scmp.lt.s32.totalorder %s21, 1
          %s295 = scalar_select %p294, %s21, 1
          %s296 = smul.addr %s295, 4
          %s297 = smul.addr %s296, 8
          %s298 = scalar_lea.vmem %s4, %s297
        $region44: #{_lambda_.1} parent=27 // pred_fallthru
          _
      $region28: #{_lambda_.1} parent=5 // pred_fallthru
        _
      %p299 = scmp.le.s32.totalorder 1, %s14
      %p300 = scmp.lt.s32.totalorder %s14, 5
      %p301 = pnand %p299, %p300
      %p302 = pneg %p301
      // Predicated region
      $region45: #{_lambda_.1} parent=5 // pred_check
        _
      $region46: #{_lambda_.1} parent=5 // pred_check_branch
        %304 = sbr.rel (%p301) target = $region48
      $region47: #{_lambda_.1} parent=5 // pred_region
        %s305 = ssub.s32 %s14, 1
        // Predicated region
        $region49: #{_lambda_.1} parent=47 // pred_check
          %p306 = pneg %p47
        $region50: #{_lambda_.1} parent=47 // pred_check_branch
          %308 = sbr.rel (%p306) target = $region52
        $region51: #{_lambda_.1} parent=47 // pred_region
          %309 = dma.done [#allocation3], 32
        $region52: #{_lambda_.1} parent=47 // pred_fallthru
          _
        %310 = sfence
        %p311 = pneg %p47
        %p312 = pneg %p44
        %p313 = scmp.lt.s32.totalorder %s23, 1
        %s314 = scalar_select %p313, %s23, 1
        %p315 = scmp.lt.s32.totalorder %s24, 1
        %s316 = scalar_select %p315, %s24, 1
        %s317 = smul.addr %s314, 2
        %s318 = sadd.s32 %s316, %s317
        %s319 = smul.addr %s318, 4
        %s320 = scalar_lea.vmem %s1, %s319
        %p321 = pneg %p75
        %p322 = pneg %p72
        %p323 = scmp.lt.s32.totalorder %s23, 1
        %s324 = scalar_select %p323, %s23, 1
        %p325 = scmp.lt.s32.totalorder %s24, 1
        %s326 = scalar_select %p325, %s24, 1
        %s327 = smul.addr %s324, 2
        %s328 = sadd.s32 %s326, %s327
        %s329 = smul.addr %s328, 4
        %s330 = scalar_lea.vmem %s2, %s329
        %p331 = pneg %p103
        %p332 = pneg %p100
        %p333 = scmp.lt.s32.totalorder %s23, 1
        %s334 = scalar_select %p333, %s23, 1
        %s335 = smul.addr %s334, 4
        %s336 = smul.addr %s335, 8
        %s337 = scalar_lea.vmem %s3, %s336
        %p338 = pneg %p129
        %p339 = pneg %p126
        %p340 = scmp.lt.s32.totalorder %s23, 1
        %s341 = scalar_select %p340, %s23, 1
        %s342 = smul.addr %s341, 4
        %s343 = smul.addr %s342, 8
        %s344 = scalar_lea.vmem %s4, %s343
        %p345 = pneg %p155
        %p346 = pneg %p152
        %p347 = pneg %p176
        %p348 = pneg %p173
        %p349 = pneg %p197
        %p350 = pneg %p194
        %p351 = pneg %p225
        %p352 = pneg %p222
        %p353 = scmp.lt.s32.totalorder %s23, 1
        %s354 = scalar_select %p353, %s23, 1
        %p355 = scmp.lt.s32.totalorder %s24, 1
        %s356 = scalar_select %p355, %s24, 1
        %s357 = smul.addr %s354, 2
        %s358 = sadd.s32 %s356, %s357
        %s359 = scalar_lea.vmem %s7, %s358
        %p360 = scmp.lt.s32.totalorder %s23, 1
        %s361 = scalar_select %p360, %s23, 1
        %p362 = scmp.lt.s32.totalorder %s24, 1
        %s363 = scalar_select %p362, %s24, 1
        %s364 = smul.addr %s361, 2
        %s365 = sadd.s32 %s363, %s364
        %s366 = smul.addr %s365, 4
        %s367 = scalar_lea.vmem %s1, %s366
        %p368 = scmp.lt.s32.totalorder %s23, 1
        %s369 = scalar_select %p368, %s23, 1
        %p370 = scmp.lt.s32.totalorder %s24, 1
        %s371 = scalar_select %p370, %s24, 1
        %s372 = smul.addr %s369, 2
        %s373 = sadd.s32 %s371, %s372
        %s374 = smul.addr %s373, 4
        %s375 = scalar_lea.vmem %s2, %s374
        %p376 = scmp.lt.s32.totalorder %s23, 1
        %s377 = scalar_select %p376, %s23, 1
        %s378 = smul.addr %s377, 4
        %s379 = smul.addr %s378, 8
        %s380 = scalar_lea.vmem %s3, %s379
        %p381 = scmp.lt.s32.totalorder %s23, 1
        %s382 = scalar_select %p381, %s23, 1
        %s383 = smul.addr %s382, 4
        %s384 = smul.addr %s383, 8
        %s385 = scalar_lea.vmem %s4, %s384
        %p386 = scmp.lt.s32.totalorder %s23, 1
        %s387 = scalar_select %p386, %s23, 1
        %p388 = scmp.lt.s32.totalorder %s24, 1
        %s389 = scalar_select %p388, %s24, 1
        %s390 = smul.addr %s387, 2
        %s391 = sadd.s32 %s389, %s390
        %s392 = scalar_lea.vmem %s7, %s391
        %s393 = smul.u32 %s23, 128
        %s394 = sld [smem:[#allocation2 + %s393]]
        %s395 = sadd.s32 %s393, 1
        %s396 = sld [smem:[#allocation2 + %s395]]
        %s397 = sadd.s32 %s393, 2
        %s398 = sld [smem:[#allocation2 + %s397]]
        %v399 = vld [vmem:[%s367] sm:$0xf]
        %v400 = vld [vmem:[%s375] sm:$0xf]
        %v401 = vstv %s394
        %v402 = vmul.f32 %v401, %v400
        %v403 = vadd.f32 %v399, %v402
        %v404 = vld [vmem:[%s380] sm:$0xff]
        %v405 = vld [vmem:[%s380 + $0x8] sm:$0xff]
        %v406 = vld [vmem:[%s380 + $0x10] sm:$0xff]
        %v407 = vld [vmem:[%s380 + $0x18] sm:$0xff]
        %v408 = vld [vmem:[%s385] sm:$0xff]
        %v409 = vld [vmem:[%s385 + $0x8] sm:$0xff]
        %v410 = vld [vmem:[%s385 + $0x10] sm:$0xff]
        %v411 = vld [vmem:[%s385 + $0x18] sm:$0xff]
        %413 = vset.pattern.permute.xlu0 0
        %414 = vperm.xlu0 %413, %v408
        %v415 = vpop.permute.xlu0 %414
        %418 = vset.pattern.permute.xlu0 0
        %419 = vperm.xlu0 %418, %v409
        %v420 = vpop.permute.xlu0 %419
        %423 = vset.pattern.permute.xlu0 0
        %424 = vperm.xlu0 %423, %v410
        %v425 = vpop.permute.xlu0 %424
        %428 = vset.pattern.permute.xlu0 0
        %429 = vperm.xlu0 %428, %v411
        %v430 = vpop.permute.xlu0 %429
        %vm432 = vcmask 31744
        %v434 = vsel %vm432, %v404, 0
        %v437 = vsel %vm432, %v405, 0
        %v440 = vsel %vm432, %v406, 0
        %v443 = vsel %vm432, %v407, 0
        %vm445 = vcmask 1043456
        %v447 = vsel %vm445, %v403, 0
        %449 = vmatprep.subr.mxu0 0.0
        %450 = vmatpush1.msra.mxu0 0.0
        %451 = vmatprep.subr.mxu0 0.0
        %452 = vmatpush1.msra.mxu0 0.0
        %453 = vmatprep.subr.mxu0 0.0
        %454 = vmatpush1.msra.mxu0 0.0
        %455 = vmatprep.subr.mxu0 0.0
        %456 = vmatpush1.msra.mxu0 0.0
        %457 = vmatprep.subr.mxu0 0.0
        %458 = vmatpush1.msra.mxu0 0.0
        %459 = vmatprep.subr.mxu0 0.0
        %460 = vmatpush1.msra.mxu0 0.0
        %461 = vmatprep.subr.mxu0 0.0
        %462 = vmatpush1.msra.mxu0 0.0
        %463 = vmatprep.subr.mxu0 0.0
        %464 = vmatpush1.msra.mxu0 0.0
        %465 = vmatprep.subr.mxu0 0.0
        %466 = vmatpush1.msra.mxu0 0.0
        %467 = vmatprep.subr.mxu0 0.0
        %468 = vmatpush1.msra.mxu0 0.0
        %469 = vmatprep.subr.mxu0 0.0
        %470 = vmatpush1.msra.mxu0 0.0
        %471 = vmatprep.subr.mxu0 0.0
        %472 = vmatpush1.msra.mxu0 0.0
        %473 = vmatprep.subr.mxu0 0.0
        %474 = vmatpush1.msra.mxu0 0.0
        %475 = vmatprep.subr.mxu0 0.0
        %476 = vmatpush1.msra.mxu0 0.0
        %477 = vmatprep.subr.mxu0 0.0
        %478 = vmatpush1.msra.mxu0 0.0
        %479 = vmatprep.subr.mxu0 0.0
        %480 = vmatpush1.msra.mxu0 %v447
        %481 = vmatprep.subr.mxu0 0.0
        %482 = vmatpush2.msra.mxu0 0.0
        %483 = vmatprep.subr.mxu0 0.0
        %484 = vmatpush2.msra.mxu0 0.0
        %485 = vmatprep.subr.mxu0 0.0
        %486 = vmatpush2.msra.mxu0 0.0
        %487 = vmatprep.subr.mxu0 0.0
        %488 = vmatpush2.msra.mxu0 0.0
        %489 = vmatprep.subr.mxu0 0.0
        %490 = vmatpush2.msra.mxu0 0.0
        %491 = vmatprep.subr.mxu0 0.0
        %492 = vmatpush2.msra.mxu0 0.0
        %493 = vmatprep.subr.mxu0 0.0
        %494 = vmatpush2.msra.mxu0 0.0
        %495 = vmatprep.subr.mxu0 0.0
        %496 = vmatpush2.msra.mxu0 0.0
        %497 = vmatprep.subr.mxu0 0.0
        %498 = vmatpush2.msra.mxu0 0.0
        %499 = vmatprep.subr.mxu0 0.0
        %500 = vmatpush2.msra.mxu0 0.0
        %501 = vmatprep.subr.mxu0 0.0
        %502 = vmatpush2.msra.mxu0 0.0
        %503 = vmatprep.subr.mxu0 0.0
        %504 = vmatpush2.msra.mxu0 0.0
        %505 = vmatprep.subr.mxu0 0.0
        %506 = vmatpush2.msra.mxu0 0.0
        %507 = vmatprep.subr.mxu0 0.0
        %508 = vmatpush2.msra.mxu0 0.0
        %509 = vmatprep.subr.mxu0 0.0
        %510 = vmatpush2.msra.mxu0 0.0
        %511 = vmatprep.subr.mxu0 0.0
        %512 = vmatpush2.msra.mxu0 0.0
        %513 = vmatprep.mubr.f32.mxu0 0.0
        %514 = vmatmul.mubr.f32.gmra.mxu0 %v434
        %v515 = vpop.f32.mrf.mxu0
        %v516 = vadd.f32 %v415, %v515
        %v517 = vpop.f32.mrf.mxu0
        %518 = vmatprep.mubr.f32.mxu0 0.0
        %519 = vmatmul.mubr.f32.gmra.mxu0 %v437
        %v520 = vpop.f32.mrf.mxu0
        %v521 = vadd.f32 %v420, %v520
        %v522 = vpop.f32.mrf.mxu0
        %523 = vmatprep.mubr.f32.mxu0 0.0
        %524 = vmatmul.mubr.f32.gmra.mxu0 %v440
        %v525 = vpop.f32.mrf.mxu0
        %v526 = vadd.f32 %v425, %v525
        %v527 = vpop.f32.mrf.mxu0
        %528 = vmatprep.mubr.f32.mxu0 0.0
        %529 = vmatmul.mubr.f32.gmra.mxu0 %v443
        %v530 = vpop.f32.mrf.mxu0
        %v531 = vadd.f32 %v430, %v530
        %v532 = vpop.f32.mrf.mxu0
        %533 = vdwg.mxu0
        %v534 = vmul.f32 %v516, 1.702
        %v535 = vmul.f32 %v521, 1.702
        %v536 = vmul.f32 %v526, 1.702
        %v537 = vmul.f32 %v531, 1.702
        %v538 = vxor.u32 %v534, 2147483648
        %v539 = vxor.u32 %v535, 2147483648
        %v540 = vxor.u32 %v536, 2147483648
        %v541 = vxor.u32 %v537, 2147483648
        %v542 = vmul.f32 %v538, 1.442695
        %v543 = vpow.pop %v542
        %v544 = vmul.f32 %v539, 1.442695
        %v545 = vpow.pop %v544
        %v546 = vmul.f32 %v540, 1.442695
        %v547 = vpow.pop %v546
        %v548 = vmul.f32 %v541, 1.442695
        %v549 = vpow.pop %v548
        %v550 = vadd.f32 %v543, 1.0
        %v551 = vadd.f32 %v545, 1.0
        %v552 = vadd.f32 %v547, 1.0
        %v553 = vadd.f32 %v549, 1.0
        %v554 = vrcp.pop %v550
        %v555 = vmul.f32 1.0, %v554
        %v556 = vrcp.pop %v551
        %v557 = vmul.f32 1.0, %v556
        %v558 = vrcp.pop %v552
        %v559 = vmul.f32 1.0, %v558
        %v560 = vrcp.pop %v553
        %v561 = vmul.f32 1.0, %v560
        %v562 = vmul.f32 %v516, %v555
        %v563 = vmul.f32 %v521, %v557
        %v564 = vmul.f32 %v526, %v559
        %v565 = vmul.f32 %v531, %v561
        %v566 = vld [vmem:[%s5] sm:$0xf]
        %v567 = vld [vmem:[%s6] sm:$0xf]
        %569 = vset.pattern.permute.xlu0 0
        %570 = vperm.xlu0 %569, %v567
        %v571 = vpop.permute.xlu0 %570
        %vm573 = vcmask 261120
        %v575 = vsel %vm573, %v566, 0
        %577 = vmatprep.subr.mxu0 0.0
        %578 = vmatpush1.msra.mxu0 0.0
        %579 = vmatprep.subr.mxu0 0.0
        %580 = vmatpush1.msra.mxu0 0.0
        %581 = vmatprep.subr.mxu0 0.0
        %582 = vmatpush1.msra.mxu0 0.0
        %583 = vmatprep.subr.mxu0 0.0
        %584 = vmatpush1.msra.mxu0 0.0
        %585 = vmatprep.subr.mxu0 0.0
        %586 = vmatpush1.msra.mxu0 0.0
        %587 = vmatprep.subr.mxu0 0.0
        %588 = vmatpush1.msra.mxu0 0.0
        %589 = vmatprep.subr.mxu0 0.0
        %590 = vmatpush1.msra.mxu0 0.0
        %591 = vmatprep.subr.mxu0 0.0
        %592 = vmatpush1.msra.mxu0 0.0
        %593 = vmatprep.subr.mxu0 0.0
        %594 = vmatpush1.msra.mxu0 0.0
        %595 = vmatprep.subr.mxu0 0.0
        %596 = vmatpush1.msra.mxu0 0.0
        %597 = vmatprep.subr.mxu0 0.0
        %598 = vmatpush1.msra.mxu0 0.0
        %599 = vmatprep.subr.mxu0 0.0
        %600 = vmatpush1.msra.mxu0 0.0
        %601 = vmatprep.subr.mxu0 0.0
        %602 = vmatpush1.msra.mxu0 %v565
        %603 = vmatprep.subr.mxu0 0.0
        %604 = vmatpush1.msra.mxu0 %v564
        %605 = vmatprep.subr.mxu0 0.0
        %606 = vmatpush1.msra.mxu0 %v563
        %607 = vmatprep.subr.mxu0 0.0
        %608 = vmatpush1.msra.mxu0 %v562
        %609 = vmatprep.subr.mxu0 0.0
        %610 = vmatpush2.msra.mxu0 0.0
        %611 = vmatprep.subr.mxu0 0.0
        %612 = vmatpush2.msra.mxu0 0.0
        %613 = vmatprep.subr.mxu0 0.0
        %614 = vmatpush2.msra.mxu0 0.0
        %615 = vmatprep.subr.mxu0 0.0
        %616 = vmatpush2.msra.mxu0 0.0
        %617 = vmatprep.subr.mxu0 0.0
        %618 = vmatpush2.msra.mxu0 0.0
        %619 = vmatprep.subr.mxu0 0.0
        %620 = vmatpush2.msra.mxu0 0.0
        %621 = vmatprep.subr.mxu0 0.0
        %622 = vmatpush2.msra.mxu0 0.0
        %623 = vmatprep.subr.mxu0 0.0
        %624 = vmatpush2.msra.mxu0 0.0
        %625 = vmatprep.subr.mxu0 0.0
        %626 = vmatpush2.msra.mxu0 0.0
        %627 = vmatprep.subr.mxu0 0.0
        %628 = vmatpush2.msra.mxu0 0.0
        %629 = vmatprep.subr.mxu0 0.0
        %630 = vmatpush2.msra.mxu0 0.0
        %631 = vmatprep.subr.mxu0 0.0
        %632 = vmatpush2.msra.mxu0 0.0
        %633 = vmatprep.subr.mxu0 0.0
        %634 = vmatpush2.msra.mxu0 0.0
        %635 = vmatprep.subr.mxu0 0.0
        %636 = vmatpush2.msra.mxu0 0.0
        %637 = vmatprep.subr.mxu0 0.0
        %638 = vmatpush2.msra.mxu0 0.0
        %639 = vmatprep.subr.mxu0 0.0
        %640 = vmatpush2.msra.mxu0 0.0
        %641 = vmatprep.mubr.f32.mxu0 0.0
        %642 = vmatmul.mubr.f32.gmra.mxu0 %v575
        %v643 = vpop.f32.mrf.mxu0
        %v644 = vadd.f32 %v571, %v643
        %v645 = vpop.f32.mrf.mxu0
        %646 = vdwg.mxu0
        %v647 = vstv %s396
        %v648 = vmul.f32 %v647, %v399
        %v649 = vstv %s398
        %v650 = vmul.f32 %v649, %v400
        %v651 = vadd.f32 %v648, %v650
        %v652 = vsub.f32 %v644, %v651
        %v653 = vmul.f32 %v652, %v652
        %v654 = vsel %vm445, %v653, 0.0
        %655 = vadd.xlane.f32.xlu0 %v654
        %v656 = vpop.xlane.xlu0 %655
        %v657 = vrot.slane %v656, 4
        %v658 = vadd.f32 %v656, %v657
        %v659 = vrot.slane %v658, 2
        %v660 = vadd.f32 %v658, %v659
        %v661 = vrot.slane %v660, 1
        %v662 = vadd.f32 %v660, %v661
        %s663 = vtos %v662
        %v664 = vstv %s663
        %665 = vst [vmem:[%s392] sm:$0x1] %v664
        %p666 = scmp.lt.s32.totalorder %s23, 1
        %s667 = scalar_select %p666, %s23, 1
        %p668 = scmp.lt.s32.totalorder %s24, 1
        %s669 = scalar_select %p668, %s24, 1
        %s670 = smul.addr %s667, 2
        %s671 = sadd.s32 %s669, %s670
        %s672 = scalar_lea.vmem %s7, %s671
        // Predicated region
        $region53: #{_lambda_.1} parent=47 // pred_check
          %p673 = pneg %p222
        $region54: #{_lambda_.1} parent=47 // pred_check_branch
          %675 = sbr.rel (%p673) target = $region56
        $region55: #{_lambda_.1} parent=47 // pred_region
          _
        $region56: #{_lambda_.1} parent=47 // pred_fallthru
          _
      $region48: #{_lambda_.1} parent=5 // pred_fallthru
        _
      %p676 = scmp.le.s32.totalorder 2, %s14
      // Predicated region
      $region57: #{_lambda_.1} parent=5 // pred_check
        %p677 = pneg %p676
      $region58: #{_lambda_.1} parent=5 // pred_check_branch
        %679 = sbr.rel (%p677) target = $region60
      $region59: #{_lambda_.1} parent=5 // pred_region
        %s680 = ssub.s32 %s14, 2
        // Predicated region
        $region61: #{_lambda_.1} parent=59 // pred_check
          %p681 = pneg %p228
        $region62: #{_lambda_.1} parent=59 // pred_check_branch
          %683 = sbr.rel (%p681) target = $region64
        $region63: #{_lambda_.1} parent=59 // pred_region
          %p684 = scmp.lt.s32.totalorder %s25, 1
          %s685 = scalar_select %p684, %s25, 1
          %p686 = scmp.lt.s32.totalorder %s26, 1
          %s687 = scalar_select %p686, %s26, 1
          %s688 = smul.addr %s685, 2
          %s689 = sadd.s32 %s687, %s688
          %s690 = scalar_lea.vmem %s7, %s689
        $region64: #{_lambda_.1} parent=59 // pred_fallthru
          _
      $region60: #{_lambda_.1} parent=5 // pred_fallthru
        _
    $region6: #{_lambda_.1} parent=1 // loop_footer
      %s18 = sadd.s32 1, %s14
    $region7: #{_lambda_.1} parent=1 // loop_footer_branch
      %13 = sbr.rel target = $region3
    $region8: #{_lambda_.1} parent=1 // loop_exit
      _
    %691 = vsyncpa [#allocation3], 1
    %s692 = scalar_lea.sflag [#allocation3], 1
    %693 = vsyncpa %s692, 1

</llo_original>
